<compile_context>
chip_gen: v7x
topology: tpu7x:2x2x1
jax: 0.10.0
libtpu: 0.0.40
codegen_flags: <defaults>
</compile_context>

<pallas_src>
import functools

import jax
import jax.numpy as jnp
from jax import lax
from jax.experimental import pallas as pl
from jax.experimental.pallas import tpu as pltpu

NUM_CHANNELS = 256   # Timesteps(num_channels=256)
LN_EPS = 1e-5        # nn.LayerNorm default eps


# --------------------------------------------------------------------------
# Sinusoidal timestep projection + 3-layer MLP.  T is ~a handful of rows, so a
# dedicated kernel would be pure launch/DMA overhead — keep it in XLA.
# Matches diffusers Timesteps(256, flip_sin_to_cos=True, downscale_freq_shift=0)
# and TimestepEmbedding(256, D), followed by SiLU + Linear(D, 2D).
# --------------------------------------------------------------------------
def _timestep_proj(timestep, num_channels=NUM_CHANNELS, max_period=10000.0):
    half = num_channels // 2
    exponent = (-jnp.log(jnp.float32(max_period))
                * jnp.arange(half, dtype=jnp.float32) / jnp.float32(half))
    freqs = jnp.exp(exponent)
    args = timestep.astype(jnp.float32)[:, None] * freqs[None, :]
    # flip_sin_to_cos=True -> concat([cos, sin])
    return jnp.concatenate([jnp.cos(args), jnp.sin(args)], axis=-1)


def _emb_mlp(temb, w1, b1, w2, b2, w3, b3):
    h = temb @ w1 + b1          # TimestepEmbedding.linear_1
    h = h * jax.nn.sigmoid(h)   # internal SiLU
    h = h @ w2 + b2             # TimestepEmbedding.linear_2
    h = h * jax.nn.sigmoid(h)   # outer self.silu
    return h @ w3 + b3          # self.linear: D -> 2D


# --------------------------------------------------------------------------
# Kernels
# --------------------------------------------------------------------------
def _adaln_packed_kernel(x_ref, b_ref, p_ref, bc_ref, rep_ref, ss_ref, o_ref):
    """Lane-dense path for D < 128 with 128 % D == 0 (p = 128 // D rows per
    128-lane row).

    p_ref  : [Dp, p]    block-diag 1/D down-projection (segment means)
    bc_ref : [p, Dp]    block-ones broadcast-back matrix
    rep_ref: [p, p*T]   repeats each segment's batch index T times along lanes
    ss_ref : [p*T, 2Dp] concatenated block-diag scale|shift gather table
    """
    dp = x_ref.shape[-1]          # = 128
    p = b_ref.shape[-1]
    t = rep_ref.shape[-1] // p

    x = x_ref[...].astype(jnp.float32)                                   # [tile, Dp]

    # --- per-segment stats: down-project to [tile, p], rsqrt there, broadcast back
    m = jnp.dot(x, p_ref[...], preferred_element_type=jnp.float32)       # [tile, p]
    msq = jnp.dot(x * x, p_ref[...], preferred_element_type=jnp.float32)  # [tile, p]
    inv = lax.rsqrt(msq - m * m + LN_EPS)                                 # [tile, p]
    m_b = jnp.dot(m, bc_ref[...], preferred_element_type=jnp.float32)     # [tile, Dp]
    inv_b = jnp.dot(inv, bc_ref[...], preferred_element_type=jnp.float32)  # [tile, Dp]
    y = (x - m_b) * inv_b

    # --- in-kernel one-hot gather of scale/shift (no [N, T] one-hot in HBM)
    b = b_ref[...].astype(jnp.float32)                                    # [tile, p]
    rep = jnp.dot(b, rep_ref[...], preferred_element_type=jnp.float32)    # [tile, p*T]
    tmod = (lax.broadcasted_iota(jnp.int32, rep.shape, 1) % t).astype(jnp.float32)
    oh = (rep == tmod).astype(jnp.float32)                                # exact 0/1
    ss = jnp.dot(oh, ss_ref[...], preferred_element_type=jnp.float32)     # [tile, 2*Dp]
    scale = ss[:, :dp]
    shift = ss[:, dp:]

    o_ref[...] = (y * (1.0 + scale) + shift).astype(o_ref.dtype)


def _adaln_generic_kernel(x_ref, b_ref, ss_ref, o_ref, *, d_valid):
    """Generic path: feature dim padded to a multiple of 128 (lane-dense
    stores).  Padded x lanes are zero so sums over the full row are exact when
    divided by the true d_valid."""
    dpad = x_ref.shape[-1]
    t = ss_ref.shape[0]

    x = x_ref[...].astype(jnp.float32)                                    # [tile, Dpad]
    inv_d = 1.0 / d_valid
    m = jnp.sum(x, axis=-1, keepdims=True) * inv_d
    msq = jnp.sum(x * x, axis=-1, keepdims=True) * inv_d
    inv = lax.rsqrt(msq - m * m + LN_EPS)
    y = (x - m) * inv

    b = b_ref[...]                                                        # [tile, 1] i32
    tids = lax.broadcasted_iota(jnp.int32, (x.shape[0], t), 1)
    oh = (b == tids).astype(jnp.float32)                                  # [tile, T]
    ss = jnp.dot(oh, ss_ref[...], preferred_element_type=jnp.float32)     # [tile, 2*Dpad]
    scale = ss[:, :dpad]
    shift = ss[:, dpad:]

    o_ref[...] = (y * (1.0 + scale) + shift).astype(o_ref.dtype)


# --------------------------------------------------------------------------
# Wrapper
# --------------------------------------------------------------------------
def _default_tile_rows(n_rows, row_width, itemsize):
    """Row-tile heuristic: VMEM-budgeted, dtype-aware, and >= 4 grid steps when
    there is enough work (>= 2 steps per TensorCore under v7x megacore), with a
    256-row floor so the ~0.35us per-step overhead stays amortized."""
    sub = {1: 32, 2: 16}.get(itemsize, 8)             # min sublane tile per dtype
    # Double-buffered x-in / x-out blocks plus the (lane-padded) int32 batch block.
    per_row = 2 * (2 * row_width * itemsize + 128 * 4)
    budget = 12 * 1024 * 1024                         # well under scoped VMEM everywhere
    max_rows_vmem = max(sub, budget // per_row)
    target = max(256, pl.cdiv(n_rows, 4))             # >= 4 grid steps, 256-row floor
    tile = min(2048, max_rows_vmem, target)
    tile = max(sub, (tile // sub) * sub)
    return min(tile, pl.cdiv(n_rows, sub) * sub)      # don't exceed padded row count


def my_ada_layer_norm(x, timestep, batch, params, *, tile_rows=None):
    """x: [N, D] float; timestep: [T]; batch: [N] int in [0, T)."""
    w1, b1, w2, b2, w3, b3 = params
    N, D = x.shape
    T = int(timestep.shape[0])

    # Tiny timestep-embedding MLP -> [T, 2D] scale/shift table (plain JAX).
    emb = _emb_mlp(_timestep_proj(timestep), w1, b1, w2, b2, w3, b3)
    scale_tab = emb[:, :D].astype(jnp.float32)              # [T, D]
    shift_tab = emb[:, D:].astype(jnp.float32)               # [T, D]
    batch = batch.astype(jnp.int32)

    cparams = pltpu.CompilerParams(
        dimension_semantics=("parallel",),
        vmem_limit_bytes=32 * 1024 * 1024,   # actual use ~6-12 MiB; safe on v5e/v6e/v7x
    )

    packed = (D < 128) and (128 % D == 0)

    if packed:
        # -------- lane-packed path: p token rows per 128-lane row --------
        p = 128 // D
        dp = 128
        n_groups = pl.cdiv(N, p)
        tile_g = tile_rows if tile_rows is not None else _default_tile_rows(
            n_groups, dp, x.dtype.itemsize)
        n_groups_pad = pl.cdiv(n_groups, tile_g) * tile_g
        n_pad = n_groups_pad * p
        if n_pad != N:                       # ragged token count -> zero-pad rows
            x = jnp.pad(x, ((0, n_pad - N), (0, 0)))
            batch = jnp.pad(batch, (0, n_pad - N))
        x_p = x.reshape(n_groups_pad, dp)    # row-major: metadata-only reshape
        b_p = batch.reshape(n_groups_pad, p)

        eye_p = jnp.eye(p, dtype=jnp.float32)
        p_mat = jnp.kron(eye_p, jnp.full((D, 1), 1.0 / D, jnp.float32))   # [Dp, p]
        bc_mat = jnp.kron(eye_p, jnp.ones((1, D), jnp.float32))           # [p, Dp]
        rep_mat = jnp.kron(eye_p, jnp.ones((1, T), jnp.float32))          # [p, p*T]
        ss_tab = jnp.concatenate([jnp.kron(eye_p, scale_tab),
                                  jnp.kron(eye_p, shift_tab)], axis=1)    # [p*T, 2Dp]

        grid = (n_groups_pad // tile_g,)
        row_spec = pl.BlockSpec((tile_g, dp), lambda i: (i, 0))
        b_spec = pl.BlockSpec((tile_g, p), lambda i: (i, 0))

        def _full(a):   # tiny table, resident in VMEM across the whole grid
            return pl.BlockSpec(a.shape, lambda i: (0, 0))

        out = pl.pallas_call(
            _adaln_packed_kernel,
            out_shape=jax.ShapeDtypeStruct((n_groups_pad, dp), x.dtype),
            grid=grid,
            in_specs=[row_spec, b_spec, _full(p_mat), _full(bc_mat),
                      _full(rep_mat), _full(ss_tab)],
            out_specs=row_spec,
            compiler_params=cparams,
        )(x_p, b_p, p_mat, bc_mat, rep_mat, ss_tab)

        out = out.reshape(n_pad, D)
        return out[:N] if n_pad != N else out

    # -------- generic path: D >= 128 (or D not dividing 128), pad to 128 --------
    dpad = pl.cdiv(D, 128) * 128
    tile_n = tile_rows if tile_rows is not None else _default_tile_rows(
        N, dpad, x.dtype.itemsize)
    n_pad = pl.cdiv(N, tile_n) * tile_n
    pad_rows = n_pad - N
    pad_feat = dpad - D
    if pad_rows or pad_feat:
        # TODO(synk): the feature-dim pad costs one extra XLA copy of x; a
        # masked-store kernel variant could avoid it when D % 128 != 0.
        x = jnp.pad(x, ((0, pad_rows), (0, pad_feat)))
    if pad_rows:
        batch = jnp.pad(batch, (0, pad_rows))
    b2d = batch.reshape(n_pad, 1)
    ss_tab = jnp.concatenate(
        [jnp.pad(scale_tab, ((0, 0), (0, pad_feat))),
         jnp.pad(shift_tab, ((0, 0), (0, pad_feat)))], axis=1)            # [T, 2*Dpad]

    grid = (n_pad // tile_n,)
    row_spec = pl.BlockSpec((tile_n, dpad), lambda i: (i, 0))
    b_spec = pl.BlockSpec((tile_n, 1), lambda i: (i, 0))
    ss_spec = pl.BlockSpec(ss_tab.shape, lambda i: (0, 0))

    out = pl.pallas_call(
        functools.partial(_adaln_generic_kernel, d_valid=float(D)),
        out_shape=jax.ShapeDtypeStruct((n_pad, dpad), x.dtype),
        grid=grid,
        in_specs=[row_spec, b_spec, ss_spec],
        out_specs=row_spec,
        compiler_params=cparams,
    )(x, b2d, ss_tab)
    return out[:N, :D]


# --------------------------------------------------------------------------
# Pure-JAX reference for correctness checking
# --------------------------------------------------------------------------
def _reference(x, timestep, batch, params):
    w1, b1, w2, b2, w3, b3 = params
    D = x.shape[1]
    emb = _emb_mlp(_timestep_proj(timestep), w1, b1, w2, b2, w3, b3)
    scale, shift = emb[:, :D], emb[:, D:]
    mean = jnp.mean(x, axis=-1, keepdims=True)
    var = jnp.mean((x - mean) ** 2, axis=-1, keepdims=True)
    y = (x - mean) / jnp.sqrt(var + LN_EPS)
    return y * (1.0 + scale[batch]) + shift[batch]


if __name__ == "__main__":
    def init_linear(k, fan_in, fan_out):
        kw, kb = jax.random.split(k)
        lim = 1.0 / jnp.sqrt(jnp.float32(fan_in))
        w = jax.random.uniform(kw, (fan_in, fan_out), jnp.float32, -lim, lim)
        b = jax.random.uniform(kb, (1, fan_out), jnp.float32, -lim, lim)
        return w, b

    def run_case(seed, N, D, T):
        k = jax.random.PRNGKey(seed)
        k_x, k_b, k_t, k1, k2, k3 = jax.random.split(k, 6)
        x = jax.random.normal(k_x, (N, D), dtype=jnp.float32)
        timestep = jax.random.uniform(k_t, (T,), jnp.float32, 0.0, 999.0)
        batch = jax.random.randint(k_b, (N,), 0, T, dtype=jnp.int32)
        w1, b1 = init_linear(k1, NUM_CHANNELS, D)   # timestep_embbedder.linear_1
        w2, b2 = init_linear(k2, D, D)              # timestep_embbedder.linear_2
        w3, b3 = init_linear(k3, D, 2 * D)          # self.linear
        params = (w1, b1, w2, b2, w3, b3)

        out = jax.block_until_ready(my_ada_layer_norm(x, timestep, batch, params))
        ref = _reference(x, timestep, batch, params)
        assert out.shape == (N, D)
        err = float(jnp.max(jnp.abs(out - ref)))
        assert err < 5e-4, err
        return err

    # Primary case (matches PRNGKey(0)): lane-packed path, ragged token count.
    run_case(0, N=250, D=32, T=2)
    # Secondary case: generic path with feature-dim padding (D=200 -> 256).
    run_case(1, N=100, D=200, T=3)

    print("KERNEL_OK")
</pallas_src>

<mosaic_0001>
module attributes {stable_mosaic.version = 11 : i64} {
  func.func @_adaln_packed_kernel(%arg0: i32, %arg1: memref<64x128xf32, #tpu.memory_space<vmem>>, %arg2: memref<64x4xi32, #tpu.memory_space<vmem>>, %arg3: memref<128x4xf32, #tpu.memory_space<vmem>>, %arg4: memref<4x128xf32, #tpu.memory_space<vmem>>, %arg5: memref<4x8xf32, #tpu.memory_space<vmem>>, %arg6: memref<8x256xf32, #tpu.memory_space<vmem>>, %arg7: memref<64x128xf32, #tpu.memory_space<vmem>>) attributes {dimension_semantics = [#tpu.dimension_semantics<parallel>], iteration_bounds = array<i64: 1>, scalar_prefetch = 0 : i64, scratch_operands = 0 : i64, tpu.core_type = #tpu.core_type<tc>, window_params = [{transform_indices = @transform_0, window_bounds = array<i64: 64, 128>}, {transform_indices = @transform_1, window_bounds = array<i64: 64, 4>}, {pipeline_mode = #tpu.pipeline_mode<synchronous>, transform_indices = @transform_2, window_bounds = array<i64: 128, 4>}, {pipeline_mode = #tpu.pipeline_mode<synchronous>, transform_indices = @transform_3, window_bounds = array<i64: 4, 128>}, {pipeline_mode = #tpu.pipeline_mode<synchronous>, transform_indices = @transform_4, window_bounds = array<i64: 4, 8>}, {pipeline_mode = #tpu.pipeline_mode<synchronous>, transform_indices = @transform_5, window_bounds = array<i64: 8, 256>}, {transform_indices = @transform_6, window_bounds = array<i64: 64, 128>}]} {
    %c0 = arith.constant 0 : index
    %c0_0 = arith.constant 0 : index
    %0 = vector.load %arg1[%c0, %c0_0] : memref<64x128xf32, #tpu.memory_space<vmem>>, vector<64x128xf32>
    %c0_1 = arith.constant 0 : index
    %c0_2 = arith.constant 0 : index
    %1 = vector.load %arg3[%c0_1, %c0_2] : memref<128x4xf32, #tpu.memory_space<vmem>>, vector<128x4xf32>
    %cst = arith.constant dense<0.000000e+00> : vector<64x4xf32>
    %2 = tpu.matmul %0, %1, %cst {dimension_numbers = #tpu.dot_dimension_numbers<[1], [0], [0], [1], [0, 0, 1, 1], [], []>} : vector<64x128xf32>, vector<128x4xf32>, vector<64x4xf32> -> vector<64x4xf32>
    %3 = arith.mulf %0, %0 : vector<64x128xf32>
    %c0_3 = arith.constant 0 : index
    %c0_4 = arith.constant 0 : index
    %4 = vector.load %arg3[%c0_3, %c0_4] : memref<128x4xf32, #tpu.memory_space<vmem>>, vector<128x4xf32>
    %cst_5 = arith.constant dense<0.000000e+00> : vector<64x4xf32>
    %5 = tpu.matmul %3, %4, %cst_5 {dimension_numbers = #tpu.dot_dimension_numbers<[1], [0], [0], [1], [0, 0, 1, 1], [], []>} : vector<64x128xf32>, vector<128x4xf32>, vector<64x4xf32> -> vector<64x4xf32>
    %6 = arith.mulf %2, %2 : vector<64x4xf32>
    %7 = arith.subf %5, %6 : vector<64x4xf32>
    %cst_6 = arith.constant 9.99999974E-6 : f32
    %8 = vector.broadcast %cst_6 : f32 to vector<64x4xf32>
    %9 = arith.addf %7, %8 : vector<64x4xf32>
    %10 = math.rsqrt %9 : vector<64x4xf32>
    %c0_7 = arith.constant 0 : index
    %c0_8 = arith.constant 0 : index
    %11 = vector.load %arg4[%c0_7, %c0_8] : memref<4x128xf32, #tpu.memory_space<vmem>>, vector<4x128xf32>
    %cst_9 = arith.constant dense<0.000000e+00> : vector<64x128xf32>
    %12 = tpu.matmul %2, %11, %cst_9 {dimension_numbers = #tpu.dot_dimension_numbers<[1], [0], [0], [1], [0, 0, 1, 1], [], []>} : vector<64x4xf32>, vector<4x128xf32>, vector<64x128xf32> -> vector<64x128xf32>
    %c0_10 = arith.constant 0 : index
    %c0_11 = arith.constant 0 : index
    %13 = vector.load %arg4[%c0_10, %c0_11] : memref<4x128xf32, #tpu.memory_space<vmem>>, vector<4x128xf32>
    %cst_12 = arith.constant dense<0.000000e+00> : vector<64x128xf32>
    %14 = tpu.matmul %10, %13, %cst_12 {dimension_numbers = #tpu.dot_dimension_numbers<[1], [0], [0], [1], [0, 0, 1, 1], [], []>} : vector<64x4xf32>, vector<4x128xf32>, vector<64x128xf32> -> vector<64x128xf32>
    %15 = arith.subf %0, %12 : vector<64x128xf32>
    %16 = arith.mulf %15, %14 : vector<64x128xf32>
    %c0_13 = arith.constant 0 : index
    %c0_14 = arith.constant 0 : index
    %17 = vector.load %arg2[%c0_13, %c0_14] : memref<64x4xi32, #tpu.memory_space<vmem>>, vector<64x4xi32>
    %18 = arith.sitofp %17 : vector<64x4xi32> to vector<64x4xf32>
    %c0_15 = arith.constant 0 : index
    %c0_16 = arith.constant 0 : index
    %19 = vector.load %arg5[%c0_15, %c0_16] : memref<4x8xf32, #tpu.memory_space<vmem>>, vector<4x8xf32>
    %cst_17 = arith.constant dense<0.000000e+00> : vector<64x8xf32>
    %20 = tpu.matmul %18, %19, %cst_17 {dimension_numbers = #tpu.dot_dimension_numbers<[1], [0], [0], [1], [0, 0, 1, 1], [], []>} : vector<64x4xf32>, vector<4x8xf32>, vector<64x8xf32> -> vector<64x8xf32>
    %21 = tpu.iota {dimensions = array<i32: 1>} : vector<64x8xi32>
    %c2_i32 = arith.constant 2 : i32
    %c0_i32 = arith.constant 0 : i32
    %22 = arith.cmpi eq, %c2_i32, %c0_i32 : i32
    %c1_i32 = arith.constant 1 : i32
    %23 = arith.select %22, %c1_i32, %c2_i32 : i32
    %24 = vector.broadcast %23 : i32 to vector<64x8xi32>
    %25 = arith.remsi %21, %24 : vector<64x8xi32>
    %c0_i32_18 = arith.constant 0 : i32
    %26 = vector.broadcast %c0_i32_18 : i32 to vector<64x8xi32>
    %27 = arith.cmpi ne, %25, %26 : vector<64x8xi32>
    %c0_i32_19 = arith.constant 0 : i32
    %28 = vector.broadcast %c0_i32_19 : i32 to vector<64x8xi32>
    %29 = arith.cmpi slt, %25, %28 : vector<64x8xi32>
    %c0_i32_20 = arith.constant 0 : i32
    %30 = arith.cmpi slt, %23, %c0_i32_20 : i32
    %31 = vector.broadcast %30 : i1 to vector<64x8xi1>
    %32 = vector.broadcast %31 : vector<64x8xi1> to vector<64x8xi1>
    %33 = arith.xori %29, %32 : vector<64x8xi1>
    %34 = arith.andi %33, %27 : vector<64x8xi1>
    %35 = vector.broadcast %23 : i32 to vector<64x8xi32>
    %36 = arith.addi %25, %35 : vector<64x8xi32>
    %37 = arith.select %34, %36, %25 : vector<64x8xi1>, vector<64x8xi32>
    %38 = arith.sitofp %37 : vector<64x8xi32> to vector<64x8xf32>
    %39 = arith.cmpf oeq, %20, %38 : vector<64x8xf32>
    %40 = arith.extui %39 : vector<64x8xi1> to vector<64x8xi32>
    %41 = arith.sitofp %40 : vector<64x8xi32> to vector<64x8xf32>
    %c0_21 = arith.constant 0 : index
    %c0_22 = arith.constant 0 : index
    %42 = vector.load %arg6[%c0_21, %c0_22] : memref<8x256xf32, #tpu.memory_space<vmem>>, vector<8x256xf32>
    %cst_23 = arith.constant dense<0.000000e+00> : vector<64x256xf32>
    %43 = tpu.matmul %41, %42, %cst_23 {dimension_numbers = #tpu.dot_dimension_numbers<[1], [0], [0], [1], [0, 0, 1, 1], [], []>} : vector<64x8xf32>, vector<8x256xf32>, vector<64x256xf32> -> vector<64x256xf32>
    %44 = vector.extract_strided_slice %43 {offsets = [0, 0], sizes = [64, 128], strides = [1, 1]} : vector<64x256xf32> to vector<64x128xf32>
    %45 = vector.extract_strided_slice %43 {offsets = [0, 128], sizes = [64, 128], strides = [1, 1]} : vector<64x256xf32> to vector<64x128xf32>
    %cst_24 = arith.constant 1.000000e+00 : f32
    %46 = vector.broadcast %cst_24 : f32 to vector<64x128xf32>
    %47 = arith.addf %46, %44 : vector<64x128xf32>
    %48 = arith.mulf %16, %47 : vector<64x128xf32>
    %49 = arith.addf %48, %45 : vector<64x128xf32>
    %c0_25 = arith.constant 0 : index
    %c0_26 = arith.constant 0 : index
    %50 = vector.load %arg7[%c0_25, %c0_26] : memref<64x128xf32, #tpu.memory_space<vmem>>, vector<64x128xf32>
    tpu.vector_store %arg7[%c0_25, %c0_26], %49 {strides = array<i32>} : memref<64x128xf32, #tpu.memory_space<vmem>>, vector<64x128xf32>,
    return
  }
  func.func @transform_0(%arg0: i32) -> (i32, i32) {
    %c0_i32 = arith.constant 0 : i32
    %c0_i32_0 = arith.constant 0 : i32
    return %arg0, %c0_i32 : i32, i32
  }
  func.func @transform_1(%arg0: i32) -> (i32, i32) {
    %c0_i32 = arith.constant 0 : i32
    %c0_i32_0 = arith.constant 0 : i32
    return %arg0, %c0_i32 : i32, i32
  }
  func.func @transform_2(%arg0: i32) -> (i32, i32) {
    %c0_i32 = arith.constant 0 : i32
    %c0_i32_0 = arith.constant 0 : i32
    %c0_i32_1 = arith.constant 0 : i32
    return %c0_i32, %c0_i32_0 : i32, i32
  }
  func.func @transform_3(%arg0: i32) -> (i32, i32) {
    %c0_i32 = arith.constant 0 : i32
    %c0_i32_0 = arith.constant 0 : i32
    %c0_i32_1 = arith.constant 0 : i32
    return %c0_i32, %c0_i32_0 : i32, i32
  }
  func.func @transform_4(%arg0: i32) -> (i32, i32) {
    %c0_i32 = arith.constant 0 : i32
    %c0_i32_0 = arith.constant 0 : i32
    %c0_i32_1 = arith.constant 0 : i32
    return %c0_i32, %c0_i32_0 : i32, i32
  }
  func.func @transform_5(%arg0: i32) -> (i32, i32) {
    %c0_i32 = arith.constant 0 : i32
    %c0_i32_0 = arith.constant 0 : i32
    %c0_i32_1 = arith.constant 0 : i32
    return %c0_i32, %c0_i32_0 : i32, i32
  }
  func.func @transform_6(%arg0: i32) -> (i32, i32) {
    %c0_i32 = arith.constant 0 : i32
    %c0_i32_0 = arith.constant 0 : i32
    return %arg0, %c0_i32 : i32, i32
  }
}

</mosaic_0001>

<llo_original>
// kernel: tpu_custom_call.1
$region0: #{tpu_custom_call.1}
  #allocation0 [shape = 'u32[]', space=smem, size = 0x4, offset = 0x4, fixed_abs, tag = 'smem constant byte address 0x4 - core index']
  #allocation1 [shape = 'u32[144,128]{1,0:T(1,128)}', space=vmem, size = 0x12000, scoped, tag = 'internal scratch']
  %s0 = inlined_call_operand.vmem [shape: f32[64,128], index: 0, kind: input, shape index: {}]
  %s1 = inlined_call_operand.vmem [shape: s32[64,4], index: 1, kind: input, shape index: {}]
  %s2 = inlined_call_operand.vmem [shape: f32[128,4], index: 2, kind: input, shape index: {}]
  %s3 = inlined_call_operand.vmem [shape: f32[4,128], index: 3, kind: input, shape index: {}]
  %s4 = inlined_call_operand.vmem [shape: f32[4,8], index: 4, kind: input, shape index: {}]
  %s5 = inlined_call_operand.vmem [shape: f32[8,256], index: 5, kind: input, shape index: {}]
  %s6 = inlined_call_operand.hbm [shape: f32[64,128], index: 6, kind: output, shape index: {}]
  %s7 = sld [smem:[#allocation0]]
  $region34: #{tpu_custom_call.1} parent=0
    _
  %s9 = ssub.s32 1, %s7
  %s10 = scalar_select 0, %s9, %s7
  $region1: #{tpu_custom_call.1} parent=0
    #allocation2 [shape = 'u8[32768]{0}', space=vmem, size = 0x8000, scoped, tag = 'output window, operand 0, single buffered']
    #allocation3 [shape = 's32[1]{0}', space=sflag, size = 0x4, scoped, tag = 'scoped memory for tpu_custom_call.1']
    %11 = vsyncpa [#allocation3], 0
    // Predicated region
    $region2: #{tpu_custom_call.1} parent=1 // pred_check
      _
    $region3: #{tpu_custom_call.1} parent=1 // pred_check_branch
      %13 = sbr.rel (0) target = $region5
    $region4: #{tpu_custom_call.1} parent=1 // pred_region
      _
    $region5: #{tpu_custom_call.1} parent=1 // pred_fallthru
      _
    // Predicated region
    $region6: #{tpu_custom_call.1} parent=1 // pred_check
      _
    $region7: #{tpu_custom_call.1} parent=1 // pred_check_branch
      %15 = sbr.rel (0) target = $region9
    $region8: #{tpu_custom_call.1} parent=1 // pred_region
      _
    $region9: #{tpu_custom_call.1} parent=1 // pred_fallthru
      _
    // Predicated region
    $region10: #{tpu_custom_call.1} parent=1 // pred_check
      _
    $region11: #{tpu_custom_call.1} parent=1 // pred_check_branch
      %17 = sbr.rel (0) target = $region13
    $region12: #{tpu_custom_call.1} parent=1 // pred_region
      _
    $region13: #{tpu_custom_call.1} parent=1 // pred_fallthru
      _
    // Predicated region
    $region14: #{tpu_custom_call.1} parent=1 // pred_check
      _
    $region15: #{tpu_custom_call.1} parent=1 // pred_check_branch
      %19 = sbr.rel (0) target = $region17
    $region16: #{tpu_custom_call.1} parent=1 // pred_region
      _
    $region17: #{tpu_custom_call.1} parent=1 // pred_fallthru
      _
    // Predicated region
    $region18: #{tpu_custom_call.1} parent=1 // pred_check
      _
    $region19: #{tpu_custom_call.1} parent=1 // pred_check_branch
      %21 = sbr.rel (0) target = $region21
    $region20: #{tpu_custom_call.1} parent=1 // pred_region
      _
    $region21: #{tpu_custom_call.1} parent=1 // pred_fallthru
      _
    // Predicated region
    $region22: #{tpu_custom_call.1} parent=1 // pred_check
      _
    $region23: #{tpu_custom_call.1} parent=1 // pred_check_branch
      %23 = sbr.rel (0) target = $region25
    $region24: #{tpu_custom_call.1} parent=1 // pred_region
      _
    $region25: #{tpu_custom_call.1} parent=1 // pred_fallthru
      _
    %v24 = vld [vmem:[%s0] sm:$0xff]
    %v25 = vld [vmem:[%s0 + $0x8] sm:$0xff]
    %v26 = vld [vmem:[%s0 + $0x10] sm:$0xff]
    %v27 = vld [vmem:[%s0 + $0x18] sm:$0xff]
    %v28 = vld [vmem:[%s0 + $0x20] sm:$0xff]
    %v29 = vld [vmem:[%s0 + $0x28] sm:$0xff]
    %v30 = vld [vmem:[%s0 + $0x30] sm:$0xff]
    %v31 = vld [vmem:[%s0 + $0x38] sm:$0xff]
    %v32 = vld [vmem:[%s2] sm:$0xff]
    %v33 = vld [vmem:[%s2 + $0x8] sm:$0xff]
    %v34 = vld [vmem:[%s2 + $0x10] sm:$0xff]
    %v35 = vld [vmem:[%s2 + $0x18] sm:$0xff]
    %v36 = vld [vmem:[%s2 + $0x20] sm:$0xff]
    %v37 = vld [vmem:[%s2 + $0x28] sm:$0xff]
    %v38 = vld [vmem:[%s2 + $0x30] sm:$0xff]
    %v39 = vld [vmem:[%s2 + $0x38] sm:$0xff]
    %v40 = vld [vmem:[%s2 + $0x40] sm:$0xff]
    %v41 = vld [vmem:[%s2 + $0x48] sm:$0xff]
    %v42 = vld [vmem:[%s2 + $0x50] sm:$0xff]
    %v43 = vld [vmem:[%s2 + $0x58] sm:$0xff]
    %v44 = vld [vmem:[%s2 + $0x60] sm:$0xff]
    %v45 = vld [vmem:[%s2 + $0x68] sm:$0xff]
    %v46 = vld [vmem:[%s2 + $0x70] sm:$0xff]
    %v47 = vld [vmem:[%s2 + $0x78] sm:$0xff]
    %48 = vmatprep.subr.mxu0 0.0
    %49 = vmatpush1.msra.mxu0 %v32
    %50 = vmatprep.subr.mxu0 0.0
    %51 = vmatpush1.msra.mxu0 %v33
    %52 = vmatprep.subr.mxu0 0.0
    %53 = vmatpush1.msra.mxu0 %v34
    %54 = vmatprep.subr.mxu0 0.0
    %55 = vmatpush1.msra.mxu0 %v35
    %56 = vmatprep.subr.mxu0 0.0
    %57 = vmatpush1.msra.mxu0 %v36
    %58 = vmatprep.subr.mxu0 0.0
    %59 = vmatpush1.msra.mxu0 %v37
    %60 = vmatprep.subr.mxu0 0.0
    %61 = vmatpush1.msra.mxu0 %v38
    %62 = vmatprep.subr.mxu0 0.0
    %63 = vmatpush1.msra.mxu0 %v39
    %64 = vmatprep.subr.mxu0 0.0
    %65 = vmatpush1.msra.mxu0 %v40
    %66 = vmatprep.subr.mxu0 0.0
    %67 = vmatpush1.msra.mxu0 %v41
    %68 = vmatprep.subr.mxu0 0.0
    %69 = vmatpush1.msra.mxu0 %v42
    %70 = vmatprep.subr.mxu0 0.0
    %71 = vmatpush1.msra.mxu0 %v43
    %72 = vmatprep.subr.mxu0 0.0
    %73 = vmatpush1.msra.mxu0 %v44
    %74 = vmatprep.subr.mxu0 0.0
    %75 = vmatpush1.msra.mxu0 %v45
    %76 = vmatprep.subr.mxu0 0.0
    %77 = vmatpush1.msra.mxu0 %v46
    %78 = vmatprep.subr.mxu0 0.0
    %79 = vmatpush1.msra.mxu0 %v47
    %80 = vmatprep.subr.mxu0 0.0
    %81 = vmatpush1.msra.mxu0 0.0
    %82 = vmatprep.subr.mxu0 0.0
    %83 = vmatpush1.msra.mxu0 0.0
    %84 = vmatprep.subr.mxu0 0.0
    %85 = vmatpush1.msra.mxu0 0.0
    %86 = vmatprep.subr.mxu0 0.0
    %87 = vmatpush1.msra.mxu0 0.0
    %88 = vmatprep.subr.mxu0 0.0
    %89 = vmatpush1.msra.mxu0 0.0
    %90 = vmatprep.subr.mxu0 0.0
    %91 = vmatpush1.msra.mxu0 0.0
    %92 = vmatprep.subr.mxu0 0.0
    %93 = vmatpush1.msra.mxu0 0.0
    %94 = vmatprep.subr.mxu0 0.0
    %95 = vmatpush1.msra.mxu0 0.0
    %96 = vmatprep.subr.mxu0 0.0
    %97 = vmatpush1.msra.mxu0 0.0
    %98 = vmatprep.subr.mxu0 0.0
    %99 = vmatpush1.msra.mxu0 0.0
    %100 = vmatprep.subr.mxu0 0.0
    %101 = vmatpush1.msra.mxu0 0.0
    %102 = vmatprep.subr.mxu0 0.0
    %103 = vmatpush1.msra.mxu0 0.0
    %104 = vmatprep.subr.mxu0 0.0
    %105 = vmatpush1.msra.mxu0 0.0
    %106 = vmatprep.subr.mxu0 0.0
    %107 = vmatpush1.msra.mxu0 0.0
    %108 = vmatprep.subr.mxu0 0.0
    %109 = vmatpush1.msra.mxu0 0.0
    %110 = vmatprep.subr.mxu0 0.0
    %111 = vmatpush1.msra.mxu0 0.0
    %112 = vmatprep.mubr.f32.mxu0 0.0
    %113 = vmatmul.mubr.f32.gmra.mrb[0].mxu0 %v24
    %v114 = vpop.f32.mrb[0].mxu0
    %v115 = vadd.f32 0.0, %v114
    %v116 = vpop.f32.mrb[0].mxu0
    %117 = vmatprep.mubr.f32.mxu0 0.0
    %118 = vmatmul.mubr.f32.gmra.mrb[0].mxu0 %v25
    %v119 = vpop.f32.mrb[0].mxu0
    %v120 = vadd.f32 0.0, %v119
    %v121 = vpop.f32.mrb[0].mxu0
    %122 = vmatprep.mubr.f32.mxu0 0.0
    %123 = vmatmul.mubr.f32.gmra.mrb[0].mxu0 %v26
    %v124 = vpop.f32.mrb[0].mxu0
    %v125 = vadd.f32 0.0, %v124
    %v126 = vpop.f32.mrb[0].mxu0
    %127 = vmatprep.mubr.f32.mxu0 0.0
    %128 = vmatmul.mubr.f32.gmra.mrb[0].mxu0 %v27
    %v129 = vpop.f32.mrb[0].mxu0
    %v130 = vadd.f32 0.0, %v129
    %v131 = vpop.f32.mrb[0].mxu0
    %132 = vmatprep.mubr.f32.mxu0 0.0
    %133 = vmatmul.mubr.f32.gmra.mrb[0].mxu0 %v28
    %v134 = vpop.f32.mrb[0].mxu0
    %v135 = vadd.f32 0.0, %v134
    %v136 = vpop.f32.mrb[0].mxu0
    %137 = vmatprep.mubr.f32.mxu0 0.0
    %138 = vmatmul.mubr.f32.gmra.mrb[0].mxu0 %v29
    %v139 = vpop.f32.mrb[0].mxu0
    %v140 = vadd.f32 0.0, %v139
    %v141 = vpop.f32.mrb[0].mxu0
    %142 = vmatprep.mubr.f32.mxu0 0.0
    %143 = vmatmul.mubr.f32.gmra.mrb[0].mxu0 %v30
    %v144 = vpop.f32.mrb[0].mxu0
    %v145 = vadd.f32 0.0, %v144
    %v146 = vpop.f32.mrb[0].mxu0
    %147 = vmatprep.mubr.f32.mxu0 0.0
    %148 = vmatmul.mubr.f32.gmra.mrb[0].mxu0 %v31
    %v149 = vpop.f32.mrb[0].mxu0
    %v150 = vadd.f32 0.0, %v149
    %v151 = vpop.f32.mrb[0].mxu0
    %152 = vdwg.mxu0
    %v153 = vmul.f32 %v24, %v24
    %v154 = vmul.f32 %v25, %v25
    %v155 = vmul.f32 %v26, %v26
    %v156 = vmul.f32 %v27, %v27
    %v157 = vmul.f32 %v28, %v28
    %v158 = vmul.f32 %v29, %v29
    %v159 = vmul.f32 %v30, %v30
    %v160 = vmul.f32 %v31, %v31
    %161 = vmatprep.subr.mxu0 0.0
    %162 = vmatpush1.msra.mxu0 %v32
    %163 = vmatprep.subr.mxu0 0.0
    %164 = vmatpush1.msra.mxu0 %v33
    %165 = vmatprep.subr.mxu0 0.0
    %166 = vmatpush1.msra.mxu0 %v34
    %167 = vmatprep.subr.mxu0 0.0
    %168 = vmatpush1.msra.mxu0 %v35
    %169 = vmatprep.subr.mxu0 0.0
    %170 = vmatpush1.msra.mxu0 %v36
    %171 = vmatprep.subr.mxu0 0.0
    %172 = vmatpush1.msra.mxu0 %v37
    %173 = vmatprep.subr.mxu0 0.0
    %174 = vmatpush1.msra.mxu0 %v38
    %175 = vmatprep.subr.mxu0 0.0
    %176 = vmatpush1.msra.mxu0 %v39
    %177 = vmatprep.subr.mxu0 0.0
    %178 = vmatpush1.msra.mxu0 %v40
    %179 = vmatprep.subr.mxu0 0.0
    %180 = vmatpush1.msra.mxu0 %v41
    %181 = vmatprep.subr.mxu0 0.0
    %182 = vmatpush1.msra.mxu0 %v42
    %183 = vmatprep.subr.mxu0 0.0
    %184 = vmatpush1.msra.mxu0 %v43
    %185 = vmatprep.subr.mxu0 0.0
    %186 = vmatpush1.msra.mxu0 %v44
    %187 = vmatprep.subr.mxu0 0.0
    %188 = vmatpush1.msra.mxu0 %v45
    %189 = vmatprep.subr.mxu0 0.0
    %190 = vmatpush1.msra.mxu0 %v46
    %191 = vmatprep.subr.mxu0 0.0
    %192 = vmatpush1.msra.mxu0 %v47
    %193 = vmatprep.subr.mxu0 0.0
    %194 = vmatpush1.msra.mxu0 0.0
    %195 = vmatprep.subr.mxu0 0.0
    %196 = vmatpush1.msra.mxu0 0.0
    %197 = vmatprep.subr.mxu0 0.0
    %198 = vmatpush1.msra.mxu0 0.0
    %199 = vmatprep.subr.mxu0 0.0
    %200 = vmatpush1.msra.mxu0 0.0
    %201 = vmatprep.subr.mxu0 0.0
    %202 = vmatpush1.msra.mxu0 0.0
    %203 = vmatprep.subr.mxu0 0.0
    %204 = vmatpush1.msra.mxu0 0.0
    %205 = vmatprep.subr.mxu0 0.0
    %206 = vmatpush1.msra.mxu0 0.0
    %207 = vmatprep.subr.mxu0 0.0
    %208 = vmatpush1.msra.mxu0 0.0
    %209 = vmatprep.subr.mxu0 0.0
    %210 = vmatpush1.msra.mxu0 0.0
    %211 = vmatprep.subr.mxu0 0.0
    %212 = vmatpush1.msra.mxu0 0.0
    %213 = vmatprep.subr.mxu0 0.0
    %214 = vmatpush1.msra.mxu0 0.0
    %215 = vmatprep.subr.mxu0 0.0
    %216 = vmatpush1.msra.mxu0 0.0
    %217 = vmatprep.subr.mxu0 0.0
    %218 = vmatpush1.msra.mxu0 0.0
    %219 = vmatprep.subr.mxu0 0.0
    %220 = vmatpush1.msra.mxu0 0.0
    %221 = vmatprep.subr.mxu0 0.0
    %222 = vmatpush1.msra.mxu0 0.0
    %223 = vmatprep.subr.mxu0 0.0
    %224 = vmatpush1.msra.mxu0 0.0
    %225 = vmatprep.mubr.f32.mxu0 0.0
    %226 = vmatmul.mubr.f32.gmra.mrb[0].mxu0 %v153
    %v227 = vpop.f32.mrb[0].mxu0
    %v228 = vadd.f32 0.0, %v227
    %v229 = vpop.f32.mrb[0].mxu0
    %230 = vmatprep.mubr.f32.mxu0 0.0
    %231 = vmatmul.mubr.f32.gmra.mrb[0].mxu0 %v154
    %v232 = vpop.f32.mrb[0].mxu0
    %v233 = vadd.f32 0.0, %v232
    %v234 = vpop.f32.mrb[0].mxu0
    %235 = vmatprep.mubr.f32.mxu0 0.0
    %236 = vmatmul.mubr.f32.gmra.mrb[0].mxu0 %v155
    %v237 = vpop.f32.mrb[0].mxu0
    %v238 = vadd.f32 0.0, %v237
    %v239 = vpop.f32.mrb[0].mxu0
    %240 = vmatprep.mubr.f32.mxu0 0.0
    %241 = vmatmul.mubr.f32.gmra.mrb[0].mxu0 %v156
    %v242 = vpop.f32.mrb[0].mxu0
    %v243 = vadd.f32 0.0, %v242
    %v244 = vpop.f32.mrb[0].mxu0
    %245 = vmatprep.mubr.f32.mxu0 0.0
    %246 = vmatmul.mubr.f32.gmra.mrb[0].mxu0 %v157
    %v247 = vpop.f32.mrb[0].mxu0
    %v248 = vadd.f32 0.0, %v247
    %v249 = vpop.f32.mrb[0].mxu0
    %250 = vmatprep.mubr.f32.mxu0 0.0
    %251 = vmatmul.mubr.f32.gmra.mrb[0].mxu0 %v158
    %v252 = vpop.f32.mrb[0].mxu0
    %v253 = vadd.f32 0.0, %v252
    %v254 = vpop.f32.mrb[0].mxu0
    %255 = vmatprep.mubr.f32.mxu0 0.0
    %256 = vmatmul.mubr.f32.gmra.mrb[0].mxu0 %v159
    %v257 = vpop.f32.mrb[0].mxu0
    %v258 = vadd.f32 0.0, %v257
    %v259 = vpop.f32.mrb[0].mxu0
    %260 = vmatprep.mubr.f32.mxu0 0.0
    %261 = vmatmul.mubr.f32.gmra.mrb[0].mxu0 %v160
    %v262 = vpop.f32.mrb[0].mxu0
    %v263 = vadd.f32 0.0, %v262
    %v264 = vpop.f32.mrb[0].mxu0
    %265 = vdwg.mxu0
    %v266 = vmul.f32 %v115, %v115
    %v267 = vmul.f32 %v120, %v120
    %v268 = vmul.f32 %v125, %v125
    %v269 = vmul.f32 %v130, %v130
    %v270 = vmul.f32 %v135, %v135
    %v271 = vmul.f32 %v140, %v140
    %v272 = vmul.f32 %v145, %v145
    %v273 = vmul.f32 %v150, %v150
    %v274 = vsub.f32 %v228, %v266
    %v275 = vsub.f32 %v233, %v267
    %v276 = vsub.f32 %v238, %v268
    %v277 = vsub.f32 %v243, %v269
    %v278 = vsub.f32 %v248, %v270
    %v279 = vsub.f32 %v253, %v271
    %v280 = vsub.f32 %v258, %v272
    %v281 = vsub.f32 %v263, %v273
    %v282 = vadd.f32 %v274, 1e-05
    %v283 = vadd.f32 %v275, 1e-05
    %v284 = vadd.f32 %v276, 1e-05
    %v285 = vadd.f32 %v277, 1e-05
    %v286 = vadd.f32 %v278, 1e-05
    %v287 = vadd.f32 %v279, 1e-05
    %v288 = vadd.f32 %v280, 1e-05
    %v289 = vadd.f32 %v281, 1e-05
    %v290 = vrsqrt.pop %v282
    %v291 = vrsqrt.pop %v283
    %v292 = vrsqrt.pop %v284
    %v293 = vrsqrt.pop %v285
    %v294 = vrsqrt.pop %v286
    %v295 = vrsqrt.pop %v287
    %v296 = vrsqrt.pop %v288
    %v297 = vrsqrt.pop %v289
    %v298 = vld [vmem:[%s3] sm:$0xf]
    %vm299 = vcmask 31744
    %v301 = vsel %vm299, %v115, 0
    %v304 = vsel %vm299, %v120, 0
    %v307 = vsel %vm299, %v125, 0
    %v310 = vsel %vm299, %v130, 0
    %v313 = vsel %vm299, %v135, 0
    %v316 = vsel %vm299, %v140, 0
    %v319 = vsel %vm299, %v145, 0
    %v322 = vsel %vm299, %v150, 0
    %vm324 = vcmask 1043456
    %v326 = vsel %vm324, %v298, 0
    %328 = vmatprep.subr.mxu0 0.0
    %329 = vmatpush1.msra.mxu0 %v326
    %330 = vmatprep.subr.mxu0 0.0
    %331 = vmatpush1.msra.mxu0 0.0
    %332 = vmatprep.subr.mxu0 0.0
    %333 = vmatpush1.msra.mxu0 0.0
    %334 = vmatprep.subr.mxu0 0.0
    %335 = vmatpush1.msra.mxu0 0.0
    %336 = vmatprep.subr.mxu0 0.0
    %337 = vmatpush1.msra.mxu0 0.0
    %338 = vmatprep.subr.mxu0 0.0
    %339 = vmatpush1.msra.mxu0 0.0
    %340 = vmatprep.subr.mxu0 0.0
    %341 = vmatpush1.msra.mxu0 0.0
    %342 = vmatprep.subr.mxu0 0.0
    %343 = vmatpush1.msra.mxu0 0.0
    %344 = vmatprep.subr.mxu0 0.0
    %345 = vmatpush1.msra.mxu0 0.0
    %346 = vmatprep.subr.mxu0 0.0
    %347 = vmatpush1.msra.mxu0 0.0
    %348 = vmatprep.subr.mxu0 0.0
    %349 = vmatpush1.msra.mxu0 0.0
    %350 = vmatprep.subr.mxu0 0.0
    %351 = vmatpush1.msra.mxu0 0.0
    %352 = vmatprep.subr.mxu0 0.0
    %353 = vmatpush1.msra.mxu0 0.0
    %354 = vmatprep.subr.mxu0 0.0
    %355 = vmatpush1.msra.mxu0 0.0
    %356 = vmatprep.subr.mxu0 0.0
    %357 = vmatpush1.msra.mxu0 0.0
    %358 = vmatprep.subr.mxu0 0.0
    %359 = vmatpush1.msra.mxu0 0.0
    %360 = vmatprep.subr.mxu0 0.0
    %361 = vmatpush1.msra.mxu0 0.0
    %362 = vmatprep.subr.mxu0 0.0
    %363 = vmatpush1.msra.mxu0 0.0
    %364 = vmatprep.subr.mxu0 0.0
    %365 = vmatpush1.msra.mxu0 0.0
    %366 = vmatprep.subr.mxu0 0.0
    %367 = vmatpush1.msra.mxu0 0.0
    %368 = vmatprep.subr.mxu0 0.0
    %369 = vmatpush1.msra.mxu0 0.0
    %370 = vmatprep.subr.mxu0 0.0
    %371 = vmatpush1.msra.mxu0 0.0
    %372 = vmatprep.subr.mxu0 0.0
    %373 = vmatpush1.msra.mxu0 0.0
    %374 = vmatprep.subr.mxu0 0.0
    %375 = vmatpush1.msra.mxu0 0.0
    %376 = vmatprep.subr.mxu0 0.0
    %377 = vmatpush1.msra.mxu0 0.0
    %378 = vmatprep.subr.mxu0 0.0
    %379 = vmatpush1.msra.mxu0 0.0
    %380 = vmatprep.subr.mxu0 0.0
    %381 = vmatpush1.msra.mxu0 0.0
    %382 = vmatprep.subr.mxu0 0.0
    %383 = vmatpush1.msra.mxu0 0.0
    %384 = vmatprep.subr.mxu0 0.0
    %385 = vmatpush1.msra.mxu0 0.0
    %386 = vmatprep.subr.mxu0 0.0
    %387 = vmatpush1.msra.mxu0 0.0
    %388 = vmatprep.subr.mxu0 0.0
    %389 = vmatpush1.msra.mxu0 0.0
    %390 = vmatprep.subr.mxu0 0.0
    %391 = vmatpush1.msra.mxu0 0.0
    %392 = vmatprep.mubr.f32.mxu0 0.0
    %393 = vmatmul.mubr.f32.gmra.mrb[0].mxu0 %v301
    %v394 = vpop.f32.mrb[0].mxu0
    %v395 = vadd.f32 0.0, %v394
    %v396 = vpop.f32.mrb[0].mxu0
    %397 = vmatprep.mubr.f32.mxu0 0.0
    %398 = vmatmul.mubr.f32.gmra.mrb[0].mxu0 %v304
    %v399 = vpop.f32.mrb[0].mxu0
    %v400 = vadd.f32 0.0, %v399
    %v401 = vpop.f32.mrb[0].mxu0
    %402 = vmatprep.mubr.f32.mxu0 0.0
    %403 = vmatmul.mubr.f32.gmra.mrb[0].mxu0 %v307
    %v404 = vpop.f32.mrb[0].mxu0
    %v405 = vadd.f32 0.0, %v404
    %v406 = vpop.f32.mrb[0].mxu0
    %407 = vmatprep.mubr.f32.mxu0 0.0
    %408 = vmatmul.mubr.f32.gmra.mrb[0].mxu0 %v310
    %v409 = vpop.f32.mrb[0].mxu0
    %v410 = vadd.f32 0.0, %v409
    %v411 = vpop.f32.mrb[0].mxu0
    %412 = vmatprep.mubr.f32.mxu0 0.0
    %413 = vmatmul.mubr.f32.gmra.mrb[0].mxu0 %v313
    %v414 = vpop.f32.mrb[0].mxu0
    %v415 = vadd.f32 0.0, %v414
    %v416 = vpop.f32.mrb[0].mxu0
    %417 = vmatprep.mubr.f32.mxu0 0.0
    %418 = vmatmul.mubr.f32.gmra.mrb[0].mxu0 %v316
    %v419 = vpop.f32.mrb[0].mxu0
    %v420 = vadd.f32 0.0, %v419
    %v421 = vpop.f32.mrb[0].mxu0
    %422 = vmatprep.mubr.f32.mxu0 0.0
    %423 = vmatmul.mubr.f32.gmra.mrb[0].mxu0 %v319
    %v424 = vpop.f32.mrb[0].mxu0
    %v425 = vadd.f32 0.0, %v424
    %v426 = vpop.f32.mrb[0].mxu0
    %427 = vmatprep.mubr.f32.mxu0 0.0
    %428 = vmatmul.mubr.f32.gmra.mrb[0].mxu0 %v322
    %v429 = vpop.f32.mrb[0].mxu0
    %v430 = vadd.f32 0.0, %v429
    %v431 = vpop.f32.mrb[0].mxu0
    %432 = vdwg.mxu0
    %v434 = vsel %vm299, %v290, 0
    %v437 = vsel %vm299, %v291, 0
    %v440 = vsel %vm299, %v292, 0
    %v443 = vsel %vm299, %v293, 0
    %v446 = vsel %vm299, %v294, 0
    %v449 = vsel %vm299, %v295, 0
    %v452 = vsel %vm299, %v296, 0
    %v455 = vsel %vm299, %v297, 0
    %457 = vmatprep.subr.mxu0 0.0
    %458 = vmatpush1.msra.mxu0 %v326
    %459 = vmatprep.subr.mxu0 0.0
    %460 = vmatpush1.msra.mxu0 0.0
    %461 = vmatprep.subr.mxu0 0.0
    %462 = vmatpush1.msra.mxu0 0.0
    %463 = vmatprep.subr.mxu0 0.0
    %464 = vmatpush1.msra.mxu0 0.0
    %465 = vmatprep.subr.mxu0 0.0
    %466 = vmatpush1.msra.mxu0 0.0
    %467 = vmatprep.subr.mxu0 0.0
    %468 = vmatpush1.msra.mxu0 0.0
    %469 = vmatprep.subr.mxu0 0.0
    %470 = vmatpush1.msra.mxu0 0.0
    %471 = vmatprep.subr.mxu0 0.0
    %472 = vmatpush1.msra.mxu0 0.0
    %473 = vmatprep.subr.mxu0 0.0
    %474 = vmatpush1.msra.mxu0 0.0
    %475 = vmatprep.subr.mxu0 0.0
    %476 = vmatpush1.msra.mxu0 0.0
    %477 = vmatprep.subr.mxu0 0.0
    %478 = vmatpush1.msra.mxu0 0.0
    %479 = vmatprep.subr.mxu0 0.0
    %480 = vmatpush1.msra.mxu0 0.0
    %481 = vmatprep.subr.mxu0 0.0
    %482 = vmatpush1.msra.mxu0 0.0
    %483 = vmatprep.subr.mxu0 0.0
    %484 = vmatpush1.msra.mxu0 0.0
    %485 = vmatprep.subr.mxu0 0.0
    %486 = vmatpush1.msra.mxu0 0.0
    %487 = vmatprep.subr.mxu0 0.0
    %488 = vmatpush1.msra.mxu0 0.0
    %489 = vmatprep.subr.mxu0 0.0
    %490 = vmatpush1.msra.mxu0 0.0
    %491 = vmatprep.subr.mxu0 0.0
    %492 = vmatpush1.msra.mxu0 0.0
    %493 = vmatprep.subr.mxu0 0.0
    %494 = vmatpush1.msra.mxu0 0.0
    %495 = vmatprep.subr.mxu0 0.0
    %496 = vmatpush1.msra.mxu0 0.0
    %497 = vmatprep.subr.mxu0 0.0
    %498 = vmatpush1.msra.mxu0 0.0
    %499 = vmatprep.subr.mxu0 0.0
    %500 = vmatpush1.msra.mxu0 0.0
    %501 = vmatprep.subr.mxu0 0.0
    %502 = vmatpush1.msra.mxu0 0.0
    %503 = vmatprep.subr.mxu0 0.0
    %504 = vmatpush1.msra.mxu0 0.0
    %505 = vmatprep.subr.mxu0 0.0
    %506 = vmatpush1.msra.mxu0 0.0
    %507 = vmatprep.subr.mxu0 0.0
    %508 = vmatpush1.msra.mxu0 0.0
    %509 = vmatprep.subr.mxu0 0.0
    %510 = vmatpush1.msra.mxu0 0.0
    %511 = vmatprep.subr.mxu0 0.0
    %512 = vmatpush1.msra.mxu0 0.0
    %513 = vmatprep.subr.mxu0 0.0
    %514 = vmatpush1.msra.mxu0 0.0
    %515 = vmatprep.subr.mxu0 0.0
    %516 = vmatpush1.msra.mxu0 0.0
    %517 = vmatprep.subr.mxu0 0.0
    %518 = vmatpush1.msra.mxu0 0.0
    %519 = vmatprep.subr.mxu0 0.0
    %520 = vmatpush1.msra.mxu0 0.0
    %521 = vmatprep.mubr.f32.mxu0 0.0
    %522 = vmatmul.mubr.f32.gmra.mrb[0].mxu0 %v434
    %v523 = vpop.f32.mrb[0].mxu0
    %v524 = vadd.f32 0.0, %v523
    %v525 = vpop.f32.mrb[0].mxu0
    %526 = vmatprep.mubr.f32.mxu0 0.0
    %527 = vmatmul.mubr.f32.gmra.mrb[0].mxu0 %v437
    %v528 = vpop.f32.mrb[0].mxu0
    %v529 = vadd.f32 0.0, %v528
    %v530 = vpop.f32.mrb[0].mxu0
    %531 = vmatprep.mubr.f32.mxu0 0.0
    %532 = vmatmul.mubr.f32.gmra.mrb[0].mxu0 %v440
    %v533 = vpop.f32.mrb[0].mxu0
    %v534 = vadd.f32 0.0, %v533
    %v535 = vpop.f32.mrb[0].mxu0
    %536 = vmatprep.mubr.f32.mxu0 0.0
    %537 = vmatmul.mubr.f32.gmra.mrb[0].mxu0 %v443
    %v538 = vpop.f32.mrb[0].mxu0
    %v539 = vadd.f32 0.0, %v538
    %v540 = vpop.f32.mrb[0].mxu0
    %541 = vmatprep.mubr.f32.mxu0 0.0
    %542 = vmatmul.mubr.f32.gmra.mrb[0].mxu0 %v446
    %v543 = vpop.f32.mrb[0].mxu0
    %v544 = vadd.f32 0.0, %v543
    %v545 = vpop.f32.mrb[0].mxu0
    %546 = vmatprep.mubr.f32.mxu0 0.0
    %547 = vmatmul.mubr.f32.gmra.mrb[0].mxu0 %v449
    %v548 = vpop.f32.mrb[0].mxu0
    %v549 = vadd.f32 0.0, %v548
    %v550 = vpop.f32.mrb[0].mxu0
    %551 = vmatprep.mubr.f32.mxu0 0.0
    %552 = vmatmul.mubr.f32.gmra.mrb[0].mxu0 %v452
    %v553 = vpop.f32.mrb[0].mxu0
    %v554 = vadd.f32 0.0, %v553
    %v555 = vpop.f32.mrb[0].mxu0
    %556 = vmatprep.mubr.f32.mxu0 0.0
    %557 = vmatmul.mubr.f32.gmra.mrb[0].mxu0 %v455
    %v558 = vpop.f32.mrb[0].mxu0
    %v559 = vadd.f32 0.0, %v558
    %v560 = vpop.f32.mrb[0].mxu0
    %561 = vdwg.mxu0
    %v562 = vsub.f32 %v24, %v395
    %v563 = vsub.f32 %v25, %v400
    %v564 = vsub.f32 %v26, %v405
    %v565 = vsub.f32 %v27, %v410
    %v566 = vsub.f32 %v28, %v415
    %v567 = vsub.f32 %v29, %v420
    %v568 = vsub.f32 %v30, %v425
    %v569 = vsub.f32 %v31, %v430
    %v570 = vmul.f32 %v562, %v524
    %v571 = vmul.f32 %v563, %v529
    %v572 = vmul.f32 %v564, %v534
    %v573 = vmul.f32 %v565, %v539
    %v574 = vmul.f32 %v566, %v544
    %v575 = vmul.f32 %v567, %v549
    %v576 = vmul.f32 %v568, %v554
    %v577 = vmul.f32 %v569, %v559
    %v578 = vld [vmem:[%s1] sm:$0xff]
    %v579 = vld [vmem:[%s1 + $0x8] sm:$0xff]
    %v580 = vld [vmem:[%s1 + $0x10] sm:$0xff]
    %v581 = vld [vmem:[%s1 + $0x18] sm:$0xff]
    %v582 = vld [vmem:[%s1 + $0x20] sm:$0xff]
    %v583 = vld [vmem:[%s1 + $0x28] sm:$0xff]
    %v584 = vld [vmem:[%s1 + $0x30] sm:$0xff]
    %v585 = vld [vmem:[%s1 + $0x38] sm:$0xff]
    %v586 = vcvt.s32.f32 %v578
    %v587 = vcvt.s32.f32 %v579
    %v588 = vcvt.s32.f32 %v580
    %v589 = vcvt.s32.f32 %v581
    %v590 = vcvt.s32.f32 %v582
    %v591 = vcvt.s32.f32 %v583
    %v592 = vcvt.s32.f32 %v584
    %v593 = vcvt.s32.f32 %v585
    %v594 = vld [vmem:[%s4] sm:$0xf]
    %v596 = vsel %vm299, %v586, 0
    %v599 = vsel %vm299, %v587, 0
    %v602 = vsel %vm299, %v588, 0
    %v605 = vsel %vm299, %v589, 0
    %v608 = vsel %vm299, %v590, 0
    %v611 = vsel %vm299, %v591, 0
    %v614 = vsel %vm299, %v592, 0
    %v617 = vsel %vm299, %v593, 0
    %v620 = vsel %vm324, %v594, 0
    %622 = vmatprep.subr.mxu0 0.0
    %623 = vmatpush1.msra.mxu0 %v620
    %624 = vmatprep.subr.mxu0 0.0
    %625 = vmatpush1.msra.mxu0 0.0
    %626 = vmatprep.subr.mxu0 0.0
    %627 = vmatpush1.msra.mxu0 0.0
    %628 = vmatprep.subr.mxu0 0.0
    %629 = vmatpush1.msra.mxu0 0.0
    %630 = vmatprep.subr.mxu0 0.0
    %631 = vmatpush1.msra.mxu0 0.0
    %632 = vmatprep.subr.mxu0 0.0
    %633 = vmatpush1.msra.mxu0 0.0
    %634 = vmatprep.subr.mxu0 0.0
    %635 = vmatpush1.msra.mxu0 0.0
    %636 = vmatprep.subr.mxu0 0.0
    %637 = vmatpush1.msra.mxu0 0.0
    %638 = vmatprep.subr.mxu0 0.0
    %639 = vmatpush1.msra.mxu0 0.0
    %640 = vmatprep.subr.mxu0 0.0
    %641 = vmatpush1.msra.mxu0 0.0
    %642 = vmatprep.subr.mxu0 0.0
    %643 = vmatpush1.msra.mxu0 0.0
    %644 = vmatprep.subr.mxu0 0.0
    %645 = vmatpush1.msra.mxu0 0.0
    %646 = vmatprep.subr.mxu0 0.0
    %647 = vmatpush1.msra.mxu0 0.0
    %648 = vmatprep.subr.mxu0 0.0
    %649 = vmatpush1.msra.mxu0 0.0
    %650 = vmatprep.subr.mxu0 0.0
    %651 = vmatpush1.msra.mxu0 0.0
    %652 = vmatprep.subr.mxu0 0.0
    %653 = vmatpush1.msra.mxu0 0.0
    %654 = vmatprep.subr.mxu0 0.0
    %655 = vmatpush1.msra.mxu0 0.0
    %656 = vmatprep.subr.mxu0 0.0
    %657 = vmatpush1.msra.mxu0 0.0
    %658 = vmatprep.subr.mxu0 0.0
    %659 = vmatpush1.msra.mxu0 0.0
    %660 = vmatprep.subr.mxu0 0.0
    %661 = vmatpush1.msra.mxu0 0.0
    %662 = vmatprep.subr.mxu0 0.0
    %663 = vmatpush1.msra.mxu0 0.0
    %664 = vmatprep.subr.mxu0 0.0
    %665 = vmatpush1.msra.mxu0 0.0
    %666 = vmatprep.subr.mxu0 0.0
    %667 = vmatpush1.msra.mxu0 0.0
    %668 = vmatprep.subr.mxu0 0.0
    %669 = vmatpush1.msra.mxu0 0.0
    %670 = vmatprep.subr.mxu0 0.0
    %671 = vmatpush1.msra.mxu0 0.0
    %672 = vmatprep.subr.mxu0 0.0
    %673 = vmatpush1.msra.mxu0 0.0
    %674 = vmatprep.subr.mxu0 0.0
    %675 = vmatpush1.msra.mxu0 0.0
    %676 = vmatprep.subr.mxu0 0.0
    %677 = vmatpush1.msra.mxu0 0.0
    %678 = vmatprep.subr.mxu0 0.0
    %679 = vmatpush1.msra.mxu0 0.0
    %680 = vmatprep.subr.mxu0 0.0
    %681 = vmatpush1.msra.mxu0 0.0
    %682 = vmatprep.subr.mxu0 0.0
    %683 = vmatpush1.msra.mxu0 0.0
    %684 = vmatprep.subr.mxu0 0.0
    %685 = vmatpush1.msra.mxu0 0.0
    %686 = vmatprep.mubr.f32.mxu0 0.0
    %687 = vmatmul.mubr.f32.gmra.mrb[0].mxu0 %v596
    %v688 = vpop.f32.mrb[0].mxu0
    %v689 = vadd.f32 0.0, %v688
    %v690 = vpop.f32.mrb[0].mxu0
    %691 = vmatprep.mubr.f32.mxu0 0.0
    %692 = vmatmul.mubr.f32.gmra.mrb[0].mxu0 %v599
    %v693 = vpop.f32.mrb[0].mxu0
    %v694 = vadd.f32 0.0, %v693
    %v695 = vpop.f32.mrb[0].mxu0
    %696 = vmatprep.mubr.f32.mxu0 0.0
    %697 = vmatmul.mubr.f32.gmra.mrb[0].mxu0 %v602
    %v698 = vpop.f32.mrb[0].mxu0
    %v699 = vadd.f32 0.0, %v698
    %v700 = vpop.f32.mrb[0].mxu0
    %701 = vmatprep.mubr.f32.mxu0 0.0
    %702 = vmatmul.mubr.f32.gmra.mrb[0].mxu0 %v605
    %v703 = vpop.f32.mrb[0].mxu0
    %v704 = vadd.f32 0.0, %v703
    %v705 = vpop.f32.mrb[0].mxu0
    %706 = vmatprep.mubr.f32.mxu0 0.0
    %707 = vmatmul.mubr.f32.gmra.mrb[0].mxu0 %v608
    %v708 = vpop.f32.mrb[0].mxu0
    %v709 = vadd.f32 0.0, %v708
    %v710 = vpop.f32.mrb[0].mxu0
    %711 = vmatprep.mubr.f32.mxu0 0.0
    %712 = vmatmul.mubr.f32.gmra.mrb[0].mxu0 %v611
    %v713 = vpop.f32.mrb[0].mxu0
    %v714 = vadd.f32 0.0, %v713
    %v715 = vpop.f32.mrb[0].mxu0
    %716 = vmatprep.mubr.f32.mxu0 0.0
    %717 = vmatmul.mubr.f32.gmra.mrb[0].mxu0 %v614
    %v718 = vpop.f32.mrb[0].mxu0
    %v719 = vadd.f32 0.0, %v718
    %v720 = vpop.f32.mrb[0].mxu0
    %721 = vmatprep.mubr.f32.mxu0 0.0
    %722 = vmatmul.mubr.f32.gmra.mrb[0].mxu0 %v617
    %v723 = vpop.f32.mrb[0].mxu0
    %v724 = vadd.f32 0.0, %v723
    %v725 = vpop.f32.mrb[0].mxu0
    %726 = vdwg.mxu0
    %v727 = vlaneseq
    %v728 = vand.u32 %v727, 127
    %vm729 = vcmp.lt.s32.totalorder %v728, 0
    %v730 = vsub.s32 0, %v728
    %v731 = vsel %vm729, %v730, %v728
    %v732 = vshrl.u32 %v731, 1
    %v733 = vand.u32 %v731, 1
    %v734 = vsub.s32 0, %v733
    %v735 = vsel %vm729, %v734, %v733
    %vm736 = vcmp.ne.s32.totalorder %v735, 0
    %vm737 = vcmp.lt.s32.totalorder %v735, 0
    %vm738 = vmand %vm737, %vm736
    %v739 = vadd.s32 %v735, 2
    %v740 = vsel %vm738, %v739, %v735
    %v741 = vcvt.s32.f32 %v740
    %vm742 = vcmp.eq.f32.partialorder %v689, %v741
    %vm743 = vcmp.eq.f32.partialorder %v694, %v741
    %vm744 = vcmp.eq.f32.partialorder %v699, %v741
    %vm745 = vcmp.eq.f32.partialorder %v704, %v741
    %vm746 = vcmp.eq.f32.partialorder %v709, %v741
    %vm747 = vcmp.eq.f32.partialorder %v714, %v741
    %vm748 = vcmp.eq.f32.partialorder %v719, %v741
    %vm749 = vcmp.eq.f32.partialorder %v724, %v741
    %v750 = vsel %vm742, 1, 0
    %v751 = vsel %vm743, 1, 0
    %v752 = vsel %vm744, 1, 0
    %v753 = vsel %vm745, 1, 0
    %v754 = vsel %vm746, 1, 0
    %v755 = vsel %vm747, 1, 0
    %v756 = vsel %vm748, 1, 0
    %v757 = vsel %vm749, 1, 0
    %v758 = vcvt.s32.f32 %v750
    %v759 = vcvt.s32.f32 %v751
    %v760 = vcvt.s32.f32 %v752
    %v761 = vcvt.s32.f32 %v753
    %v762 = vcvt.s32.f32 %v754
    %v763 = vcvt.s32.f32 %v755
    %v764 = vcvt.s32.f32 %v756
    %v765 = vcvt.s32.f32 %v757
    %v766 = vld [vmem:[%s5] sm:$0xff]
    %v767 = vld [vmem:[%s5 + $0x8] sm:$0xff]
    %vm768 = vcmask 64512
    %v770 = vsel %vm768, %v758, 0
    %v773 = vsel %vm768, %v759, 0
    %v776 = vsel %vm768, %v760, 0
    %v779 = vsel %vm768, %v761, 0
    %v782 = vsel %vm768, %v762, 0
    %v785 = vsel %vm768, %v763, 0
    %v788 = vsel %vm768, %v764, 0
    %v791 = vsel %vm768, %v765, 0
    %793 = vmatprep.subr.mxu0 %v767
    %794 = vmatpush1.msra.mxu0 %v766
    %795 = vmatprep.subr.mxu0 0.0
    %796 = vmatpush1.msra.mxu0 0.0
    %797 = vmatprep.subr.mxu0 0.0
    %798 = vmatpush1.msra.mxu0 0.0
    %799 = vmatprep.subr.mxu0 0.0
    %800 = vmatpush1.msra.mxu0 0.0
    %801 = vmatprep.subr.mxu0 0.0
    %802 = vmatpush1.msra.mxu0 0.0
    %803 = vmatprep.subr.mxu0 0.0
    %804 = vmatpush1.msra.mxu0 0.0
    %805 = vmatprep.subr.mxu0 0.0
    %806 = vmatpush1.msra.mxu0 0.0
    %807 = vmatprep.subr.mxu0 0.0
    %808 = vmatpush1.msra.mxu0 0.0
    %809 = vmatprep.subr.mxu0 0.0
    %810 = vmatpush1.msra.mxu0 0.0
    %811 = vmatprep.subr.mxu0 0.0
    %812 = vmatpush1.msra.mxu0 0.0
    %813 = vmatprep.subr.mxu0 0.0
    %814 = vmatpush1.msra.mxu0 0.0
    %815 = vmatprep.subr.mxu0 0.0
    %816 = vmatpush1.msra.mxu0 0.0
    %817 = vmatprep.subr.mxu0 0.0
    %818 = vmatpush1.msra.mxu0 0.0
    %819 = vmatprep.subr.mxu0 0.0
    %820 = vmatpush1.msra.mxu0 0.0
    %821 = vmatprep.subr.mxu0 0.0
    %822 = vmatpush1.msra.mxu0 0.0
    %823 = vmatprep.subr.mxu0 0.0
    %824 = vmatpush1.msra.mxu0 0.0
    %825 = vmatprep.subr.mxu0 0.0
    %826 = vmatpush1.msra.mxu0 0.0
    %827 = vmatprep.subr.mxu0 0.0
    %828 = vmatpush1.msra.mxu0 0.0
    %829 = vmatprep.subr.mxu0 0.0
    %830 = vmatpush1.msra.mxu0 0.0
    %831 = vmatprep.subr.mxu0 0.0
    %832 = vmatpush1.msra.mxu0 0.0
    %833 = vmatprep.subr.mxu0 0.0
    %834 = vmatpush1.msra.mxu0 0.0
    %835 = vmatprep.subr.mxu0 0.0
    %836 = vmatpush1.msra.mxu0 0.0
    %837 = vmatprep.subr.mxu0 0.0
    %838 = vmatpush1.msra.mxu0 0.0
    %839 = vmatprep.subr.mxu0 0.0
    %840 = vmatpush1.msra.mxu0 0.0
    %841 = vmatprep.subr.mxu0 0.0
    %842 = vmatpush1.msra.mxu0 0.0
    %843 = vmatprep.subr.mxu0 0.0
    %844 = vmatpush1.msra.mxu0 0.0
    %845 = vmatprep.subr.mxu0 0.0
    %846 = vmatpush1.msra.mxu0 0.0
    %847 = vmatprep.subr.mxu0 0.0
    %848 = vmatpush1.msra.mxu0 0.0
    %849 = vmatprep.subr.mxu0 0.0
    %850 = vmatpush1.msra.mxu0 0.0
    %851 = vmatprep.subr.mxu0 0.0
    %852 = vmatpush1.msra.mxu0 0.0
    %853 = vmatprep.subr.mxu0 0.0
    %854 = vmatpush1.msra.mxu0 0.0
    %855 = vmatprep.subr.mxu0 0.0
    %856 = vmatpush1.msra.mxu0 0.0
    %857 = vmatprep.mubr.f32.mxu0 0.0
    %858 = vmatmul.mubr.f32.gmra.mrb[0].mxu0 %v770
    %v859 = vpop.f32.mrb[0].mxu0
    %v860 = vadd.f32 0.0, %v859
    %v861 = vpop.f32.mrb[0].mxu0
    %v862 = vadd.f32 0.0, %v861
    %863 = vmatprep.mubr.f32.mxu0 0.0
    %864 = vmatmul.mubr.f32.gmra.mrb[0].mxu0 %v773
    %v865 = vpop.f32.mrb[0].mxu0
    %v866 = vadd.f32 0.0, %v865
    %v867 = vpop.f32.mrb[0].mxu0
    %v868 = vadd.f32 0.0, %v867
    %869 = vmatprep.mubr.f32.mxu0 0.0
    %870 = vmatmul.mubr.f32.gmra.mrb[0].mxu0 %v776
    %v871 = vpop.f32.mrb[0].mxu0
    %v872 = vadd.f32 0.0, %v871
    %v873 = vpop.f32.mrb[0].mxu0
    %v874 = vadd.f32 0.0, %v873
    %875 = vmatprep.mubr.f32.mxu0 0.0
    %876 = vmatmul.mubr.f32.gmra.mrb[0].mxu0 %v779
    %v877 = vpop.f32.mrb[0].mxu0
    %v878 = vadd.f32 0.0, %v877
    %v879 = vpop.f32.mrb[0].mxu0
    %v880 = vadd.f32 0.0, %v879
    %881 = vmatprep.mubr.f32.mxu0 0.0
    %882 = vmatmul.mubr.f32.gmra.mrb[0].mxu0 %v782
    %v883 = vpop.f32.mrb[0].mxu0
    %v884 = vadd.f32 0.0, %v883
    %v885 = vpop.f32.mrb[0].mxu0
    %v886 = vadd.f32 0.0, %v885
    %887 = vmatprep.mubr.f32.mxu0 0.0
    %888 = vmatmul.mubr.f32.gmra.mrb[0].mxu0 %v785
    %v889 = vpop.f32.mrb[0].mxu0
    %v890 = vadd.f32 0.0, %v889
    %v891 = vpop.f32.mrb[0].mxu0
    %v892 = vadd.f32 0.0, %v891
    %893 = vmatprep.mubr.f32.mxu0 0.0
    %894 = vmatmul.mubr.f32.gmra.mrb[0].mxu0 %v788
    %v895 = vpop.f32.mrb[0].mxu0
    %v896 = vadd.f32 0.0, %v895
    %v897 = vpop.f32.mrb[0].mxu0
    %v898 = vadd.f32 0.0, %v897
    %899 = vmatprep.mubr.f32.mxu0 0.0
    %900 = vmatmul.mubr.f32.gmra.mrb[0].mxu0 %v791
    %v901 = vpop.f32.mrb[0].mxu0
    %v902 = vadd.f32 0.0, %v901
    %v903 = vpop.f32.mrb[0].mxu0
    %v904 = vadd.f32 0.0, %v903
    %905 = vdwg.mxu0
    %v906 = vadd.f32 %v860, 1.0
    %v907 = vadd.f32 %v866, 1.0
    %v908 = vadd.f32 %v872, 1.0
    %v909 = vadd.f32 %v878, 1.0
    %v910 = vadd.f32 %v884, 1.0
    %v911 = vadd.f32 %v890, 1.0
    %v912 = vadd.f32 %v896, 1.0
    %v913 = vadd.f32 %v902, 1.0
    %v914 = vmul.f32 %v570, %v906
    %v915 = vmul.f32 %v571, %v907
    %v916 = vmul.f32 %v572, %v908
    %v917 = vmul.f32 %v573, %v909
    %v918 = vmul.f32 %v574, %v910
    %v919 = vmul.f32 %v575, %v911
    %v920 = vmul.f32 %v576, %v912
    %v921 = vmul.f32 %v577, %v913
    %v922 = vadd.f32 %v914, %v862
    %v923 = vadd.f32 %v915, %v868
    %v924 = vadd.f32 %v916, %v874
    %v925 = vadd.f32 %v917, %v880
    %v926 = vadd.f32 %v918, %v886
    %v927 = vadd.f32 %v919, %v892
    %v928 = vadd.f32 %v920, %v898
    %v929 = vadd.f32 %v921, %v904
    %930 = vst [vmem:[#allocation2] sm:$0xff] %v922
    %931 = vst [vmem:[#allocation2 + $0x8] sm:$0xff] %v923
    %932 = vst [vmem:[#allocation2 + $0x10] sm:$0xff] %v924
    %933 = vst [vmem:[#allocation2 + $0x18] sm:$0xff] %v925
    %934 = vst [vmem:[#allocation2 + $0x20] sm:$0xff] %v926
    %935 = vst [vmem:[#allocation2 + $0x28] sm:$0xff] %v927
    %936 = vst [vmem:[#allocation2 + $0x30] sm:$0xff] %v928
    %937 = vst [vmem:[#allocation2 + $0x38] sm:$0xff] %v929
    // Predicated region
    $region26: #{tpu_custom_call.1} parent=1 // pred_check
      _
    $region27: #{tpu_custom_call.1} parent=1 // pred_check_branch
      %939 = sbr.rel (0) target = $region29
    $region28: #{tpu_custom_call.1} parent=1 // pred_region
      %s941 = ssub.s32 1024, 1024
      %942 = vsyncadd [#allocation3], %s941
      %s943 = sshll.u32 [#allocation2], 4
      %s944 = int_to_ptr.vmem [resolvable:$true] %s943
      %949 = dma.vmem_to_hbm [thread:$0]  %s944, 1024, %s6, [#allocation3], 128, 128, 8
    $region29: #{tpu_custom_call.1} parent=1 // pred_fallthru
      _
    // Predicated region
    $region30: #{tpu_custom_call.1} parent=1 // pred_check
      _
    $region31: #{tpu_custom_call.1} parent=1 // pred_check_branch
      %951 = sbr.rel (0) target = $region33
    $region32: #{tpu_custom_call.1} parent=1 // pred_region
      %952 = dma.done [#allocation3], 1024
    $region33: #{tpu_custom_call.1} parent=1 // pred_fallthru
      _
    %953 = vsyncpa [#allocation3], 1

</llo_original>
